<compile_context>
chip_gen: v6e
topology: v6e:2x2x1
jax: 0.10.0
libtpu: 0.0.40
codegen_flags: <defaults>
</compile_context>

<pallas_src>
import jax
import jax.numpy as jnp
from jax.experimental import pallas as pl
from jax.experimental.pallas import tpu as pltpu

LANE = 128


def _round_up(n: int, m: int) -> int:
    return ((n + m - 1) // m) * m


def _pad2(a, rows: int, cols: int):
    return jnp.pad(a, ((0, rows - a.shape[0]), (0, cols - a.shape[1])))


# ----------------------------------------------------------------------------
# Kernel
# ----------------------------------------------------------------------------
def _make_kernel(n_enc: int, n_dec: int, latent_p: int, compute_dtype):
    """Fused forward kernel.

    Ref order (inputs): x, eps,
                        [enc_w, enc_b] * n_enc,
                        meanstd_w, meanstd_b,
                        [dec_w, dec_b] * n_dec
    Ref order (outputs): y, mean, std
    Weights are (in_p, out_p) compute_dtype; biases are (1, out_p) f32.
    """

    def kernel(*refs):
        idx = 0
        x_ref = refs[idx]; idx += 1
        eps_ref = refs[idx]; idx += 1

        enc = []
        for _ in range(n_enc):
            enc.append((refs[idx], refs[idx + 1])); idx += 2

        ms_w, ms_b = refs[idx], refs[idx + 1]; idx += 2

        dec = []
        for _ in range(n_dec):
            dec.append((refs[idx], refs[idx + 1])); idx += 2

        y_ref, mean_ref, std_ref = refs[idx], refs[idx + 1], refs[idx + 2]

        def linear(h, w_ref, b_ref):
            # bf16 MXU matmul, f32 accumulation, f32 bias add.
            return jnp.dot(h, w_ref[...],
                           preferred_element_type=jnp.float32) + b_ref[...]

        # ---- Encoder: Linear + ReLU stack (ReLU in f32) ----
        h = x_ref[...]                       # already compute_dtype
        for w_ref, b_ref in enc:
            h = jnp.maximum(linear(h, w_ref, b_ref), 0.0).astype(compute_dtype)

        # ---- Fused mean/std projection: one MXU pass, split on lane boundary
        ms = linear(h, ms_w, ms_b)           # (tile_b, 2*latent_p) f32
        mean = ms[:, :latent_p]
        std = jnp.maximum(ms[:, latent_p:], 0.0)

        # ---- Reparameterized Normal(mean, std).sample() ----
        z = mean + std * eps_ref[...]        # f32

        # ---- Decoder: Linear + ReLU stack ----
        hc = z.astype(compute_dtype)
        out_f32 = z
        for w_ref, b_ref in dec:
            out_f32 = jnp.maximum(linear(hc, w_ref, b_ref), 0.0)
            hc = out_f32.astype(compute_dtype)

        y_ref[...] = out_f32.astype(y_ref.dtype)
        mean_ref[...] = mean.astype(mean_ref.dtype)
        std_ref[...] = std.astype(std_ref.dtype)

    return kernel


# ----------------------------------------------------------------------------
# Parameters (PyTorch-layout init + one-time TPU prep)
# ----------------------------------------------------------------------------
def init_reconstruction_params(key, channel_sizes, latent_size, num_features):
    """Deterministic init mirroring the PyTorch module shapes.
    Weights (out, in); biases (out,)."""
    params = {"enc": [], "dec": []}

    def linear_init(key, fan_in, fan_out):
        kw, kb = jax.random.split(key)
        bound = 1.0 / jnp.sqrt(fan_in)
        w = jax.random.uniform(kw, (fan_out, fan_in), jnp.float32, -bound, bound)
        b = jax.random.uniform(kb, (fan_out,), jnp.float32, -bound, bound)
        return w, b

    for c in range(len(channel_sizes) - 1):
        key, sub = jax.random.split(key)
        params["enc"].append(linear_init(sub, channel_sizes[c], channel_sizes[c + 1]))

    key, sub = jax.random.split(key)
    params["mean"] = linear_init(sub, channel_sizes[-1], latent_size)
    key, sub = jax.random.split(key)
    params["std"] = linear_init(sub, channel_sizes[-1], latent_size)

    dec_sizes = [latent_size] + list(reversed(channel_sizes)) + [num_features]
    for c in range(len(dec_sizes) - 1):
        key, sub = jax.random.split(key)
        params["dec"].append(linear_init(sub, dec_sizes[c], dec_sizes[c + 1]))

    return params


def prepare_params(params, compute_dtype=jnp.bfloat16):
    """One-time prep (hoisted out of the per-call path): transpose weights to
    (in, out), zero-pad feature dims to 128 lanes, cast weights to
    compute_dtype, keep biases in f32 as (1, out_p), and fuse mean/std into a
    single (hidden_p, 2*latent_p) projection."""

    def prep_linear(w, b):
        w = jnp.asarray(w, jnp.float32).T                       # (in, out)
        in_p = _round_up(w.shape[0], LANE)
        out_p = _round_up(w.shape[1], LANE)
        w_p = _pad2(w, in_p, out_p).astype(compute_dtype)
        b_p = _pad2(jnp.asarray(b, jnp.float32).reshape(1, -1), 1, out_p)
        return w_p, b_p

    enc = [prep_linear(w, b) for (w, b) in params["enc"]]
    mw, mb = prep_linear(*params["mean"])
    sw, sb = prep_linear(*params["std"])
    ms_w = jnp.concatenate([mw, sw], axis=1)
    ms_b = jnp.concatenate([mb, sb], axis=1)
    dec = [prep_linear(w, b) for (w, b) in params["dec"]]

    in_dim = int(params["enc"][0][0].shape[1]) if params["enc"] \
        else int(params["mean"][0].shape[1])
    latent_size = int(params["mean"][0].shape[0])
    num_features = int(params["dec"][-1][0].shape[0])

    return dict(
        enc=enc, meanstd=(ms_w, ms_b), dec=dec,
        in_dim=in_dim, in_p=_round_up(in_dim, LANE),
        latent_size=latent_size, latent_p=int(mw.shape[1]),
        num_features=num_features, num_features_p=_round_up(num_features, LANE),
        compute_dtype=compute_dtype,
    )


# ----------------------------------------------------------------------------
# Wrapper
# ----------------------------------------------------------------------------
def reconstruction_forward(x, eps, prep, tile_b=None):
    """Returns (y, mean, std) with the original (unpadded) shapes."""
    batch = x.shape[0]
    cdt = prep["compute_dtype"]
    in_p, lat_p, nf_p = prep["in_p"], prep["latent_p"], prep["num_features_p"]
    n_enc, n_dec = len(prep["enc"]), len(prep["dec"])

    if tile_b is None:
        # 128-256 row tiles for MXU efficiency; stay tight for tiny batches.
        tile_b = min(256, _round_up(batch, 8))
    padded_batch = _round_up(batch, tile_b)
    grid = (padded_batch // tile_b,)

    x_p = _pad2(jnp.asarray(x, jnp.float32), padded_batch, in_p).astype(cdt)
    eps_p = _pad2(jnp.asarray(eps, jnp.float32), padded_batch, lat_p)

    flat_inputs = [x_p, eps_p]
    for w, b in prep["enc"]:
        flat_inputs += [w, b]
    flat_inputs += list(prep["meanstd"])
    for w, b in prep["dec"]:
        flat_inputs += [w, b]

    def batch_spec(cols):
        return pl.BlockSpec((tile_b, cols), lambda i: (i, 0))

    def resident_spec(a):
        # Constant index_map: fetched once, stays resident across grid steps.
        return pl.BlockSpec(a.shape, lambda i: (0, 0))

    in_specs = [batch_spec(in_p), batch_spec(lat_p)]
    in_specs += [resident_spec(a) for a in flat_inputs[2:]]

    out_shapes = (
        jax.ShapeDtypeStruct((padded_batch, nf_p), jnp.float32),   # y
        jax.ShapeDtypeStruct((padded_batch, lat_p), jnp.float32),  # mean
        jax.ShapeDtypeStruct((padded_batch, lat_p), jnp.float32),  # std
    )
    out_specs = (batch_spec(nf_p), batch_spec(lat_p), batch_spec(lat_p))

    # VMEM budget: resident params + double-buffered batch tiles.
    def nbytes(shape, dtype):
        sz = 1
        for s in shape:
            sz *= s
        return sz * jnp.dtype(dtype).itemsize

    param_bytes = sum(a.size * a.dtype.itemsize for a in flat_inputs[2:])
    tile_bytes = (nbytes((tile_b, in_p), cdt) + nbytes((tile_b, lat_p), jnp.float32)
                  + nbytes((tile_b, nf_p), jnp.float32)
                  + 2 * nbytes((tile_b, lat_p), jnp.float32))
    est = 2 * (param_bytes + tile_bytes) + (1 << 20)
    vmem_limit = int(min(est, 100 * 1024 * 1024)) if est > (32 << 20) else None

    kernel = _make_kernel(n_enc, n_dec, lat_p, cdt)
    y_p, mean_p, std_p = pl.pallas_call(
        kernel,
        out_shape=out_shapes,
        grid=grid,
        in_specs=in_specs,
        out_specs=out_specs,
        compiler_params=pltpu.CompilerParams(
            dimension_semantics=("parallel",),
            vmem_limit_bytes=vmem_limit,
        ),
    )(*flat_inputs)

    nf, ls = prep["num_features"], prep["latent_size"]
    return y_p[:batch, :nf], mean_p[:batch, :ls], std_p[:batch, :ls]


# ----------------------------------------------------------------------------
# References
# ----------------------------------------------------------------------------
def _reference_forward(x, eps, params, compute_dtype=None):
    """Plain-JAX reference. If compute_dtype is given, matmul inputs are cast
    to it (f32 accumulation) to mirror the kernel's bf16 MXU path exactly."""

    def lin(h, w, b):
        w_t = jnp.asarray(w, jnp.float32).T
        b = jnp.asarray(b, jnp.float32)
        if compute_dtype is not None:
            return jnp.dot(h.astype(compute_dtype), w_t.astype(compute_dtype),
                           preferred_element_type=jnp.float32) + b
        return h @ w_t + b

    h = jnp.asarray(x, jnp.float32)
    for w, b in params["enc"]:
        h = jnp.maximum(lin(h, w, b), 0.0)
    mean = lin(h, *params["mean"])
    std = jnp.maximum(lin(h, *params["std"]), 0.0)
    z = mean + std * eps
    for w, b in params["dec"]:
        z = jnp.maximum(lin(z, w, b), 0.0)
    return z, mean, std


# ----------------------------------------------------------------------------
# Test
# ----------------------------------------------------------------------------
if __name__ == "__main__":
    channel_sizes = [32, 16]   # encoder: 32 -> 16
    latent_size = 8
    num_features = 32          # decoder: 8 -> 16 -> 32 -> 32

    key = jax.random.PRNGKey(0)
    kx, keps, kparams, kx2, keps2 = jax.random.split(key, 5)

    params = init_reconstruction_params(kparams, channel_sizes, latent_size,
                                        num_features)
    prep = prepare_params(params, compute_dtype=jnp.bfloat16)

    # ---- Run 1: small batch, single grid step ----
    batch = 8
    x = jax.random.normal(kx, (batch, channel_sizes[0]), dtype=jnp.float32)
    eps = jax.random.normal(keps, (batch, latent_size), dtype=jnp.float32)

    y, mean, std = reconstruction_forward(x, eps, prep)
    jax.block_until_ready((y, mean, std))

    assert y.shape == (batch, num_features)
    assert mean.shape == (batch, latent_size)
    assert std.shape == (batch, latent_size)

    # Exact-path check (bf16 matmuls, f32 accumulation) — tight tolerance.
    y_m, mean_m, std_m = _reference_forward(x, eps, params,
                                            compute_dtype=jnp.bfloat16)
    assert jnp.allclose(y, y_m, atol=1e-4, rtol=1e-4)
    assert jnp.allclose(mean, mean_m, atol=1e-4, rtol=1e-4)
    assert jnp.allclose(std, std_m, atol=1e-4, rtol=1e-4)

    # Semantics sanity check against the pure-f32 module forward.
    y_f, mean_f, std_f = _reference_forward(x, eps, params)
    assert jnp.allclose(y, y_f, atol=1e-1, rtol=1e-1)
    assert jnp.allclose(mean, mean_f, atol=1e-1, rtol=1e-1)
    assert jnp.allclose(std, std_f, atol=1e-1, rtol=1e-1)

    # ---- Run 2: multi-step batch grid (weights stay resident) ----
    batch2, tile_b2 = 24, 8
    x2 = jax.random.normal(kx2, (batch2, channel_sizes[0]), dtype=jnp.float32)
    eps2 = jax.random.normal(keps2, (batch2, latent_size), dtype=jnp.float32)

    y2, mean2, std2 = reconstruction_forward(x2, eps2, prep, tile_b=tile_b2)
    jax.block_until_ready((y2, mean2, std2))

    y2_m, mean2_m, std2_m = _reference_forward(x2, eps2, params,
                                               compute_dtype=jnp.bfloat16)
    assert y2.shape == (batch2, num_features)
    assert jnp.allclose(y2, y2_m, atol=1e-4, rtol=1e-4)
    assert jnp.allclose(mean2, mean2_m, atol=1e-4, rtol=1e-4)
    assert jnp.allclose(std2, std2_m, atol=1e-4, rtol=1e-4)

    print("KERNEL_OK")
</pallas_src>

<mosaic_0001>
module attributes {stable_mosaic.version = 11 : i64} {
  func.func @kernel(%arg0: i32, %arg1: memref<8x128xbf16, #tpu.memory_space<vmem>>, %arg2: memref<8x128xf32, #tpu.memory_space<vmem>>, %arg3: memref<128x128xbf16, #tpu.memory_space<vmem>>, %arg4: memref<1x128xf32, #tpu.memory_space<vmem>>, %arg5: memref<128x256xbf16, #tpu.memory_space<vmem>>, %arg6: memref<1x256xf32, #tpu.memory_space<vmem>>, %arg7: memref<128x128xbf16, #tpu.memory_space<vmem>>, %arg8: memref<1x128xf32, #tpu.memory_space<vmem>>, %arg9: memref<128x128xbf16, #tpu.memory_space<vmem>>, %arg10: memref<1x128xf32, #tpu.memory_space<vmem>>, %arg11: memref<128x128xbf16, #tpu.memory_space<vmem>>, %arg12: memref<1x128xf32, #tpu.memory_space<vmem>>, %arg13: memref<8x128xf32, #tpu.memory_space<vmem>>, %arg14: memref<8x128xf32, #tpu.memory_space<vmem>>, %arg15: memref<8x128xf32, #tpu.memory_space<vmem>>) attributes {dimension_semantics = [#tpu.dimension_semantics<parallel>], iteration_bounds = array<i64: 1>, scalar_prefetch = 0 : i64, scratch_operands = 0 : i64, tpu.core_type = #tpu.core_type<tc>, window_params = [{transform_indices = @transform_0, window_bounds = array<i64: 8, 128>}, {transform_indices = @transform_1, window_bounds = array<i64: 8, 128>}, {pipeline_mode = #tpu.pipeline_mode<synchronous>, transform_indices = @transform_2, window_bounds = array<i64: 128, 128>}, {pipeline_mode = #tpu.pipeline_mode<synchronous>, transform_indices = @transform_3, window_bounds = array<i64: 1, 128>}, {pipeline_mode = #tpu.pipeline_mode<synchronous>, transform_indices = @transform_4, window_bounds = array<i64: 128, 256>}, {pipeline_mode = #tpu.pipeline_mode<synchronous>, transform_indices = @transform_5, window_bounds = array<i64: 1, 256>}, {pipeline_mode = #tpu.pipeline_mode<synchronous>, transform_indices = @transform_6, window_bounds = array<i64: 128, 128>}, {pipeline_mode = #tpu.pipeline_mode<synchronous>, transform_indices = @transform_7, window_bounds = array<i64: 1, 128>}, {pipeline_mode = #tpu.pipeline_mode<synchronous>, transform_indices = @transform_8, window_bounds = array<i64: 128, 128>}, {pipeline_mode = #tpu.pipeline_mode<synchronous>, transform_indices = @transform_9, window_bounds = array<i64: 1, 128>}, {pipeline_mode = #tpu.pipeline_mode<synchronous>, transform_indices = @transform_10, window_bounds = array<i64: 128, 128>}, {pipeline_mode = #tpu.pipeline_mode<synchronous>, transform_indices = @transform_11, window_bounds = array<i64: 1, 128>}, {transform_indices = @transform_12, window_bounds = array<i64: 8, 128>}, {transform_indices = @transform_13, window_bounds = array<i64: 8, 128>}, {transform_indices = @transform_14, window_bounds = array<i64: 8, 128>}]} {
    %c0 = arith.constant 0 : index
    %c0_0 = arith.constant 0 : index
    %0 = vector.load %arg1[%c0, %c0_0] : memref<8x128xbf16, #tpu.memory_space<vmem>>, vector<8x128xbf16>
    %c0_1 = arith.constant 0 : index
    %c0_2 = arith.constant 0 : index
    %1 = vector.load %arg3[%c0_1, %c0_2] : memref<128x128xbf16, #tpu.memory_space<vmem>>, vector<128x128xbf16>
    %cst = arith.constant dense<0.000000e+00> : vector<8x128xf32>
    %2 = tpu.matmul %0, %1, %cst {dimension_numbers = #tpu.dot_dimension_numbers<[1], [0], [0], [1], [0, 0, 1, 1], [], []>} : vector<8x128xbf16>, vector<128x128xbf16>, vector<8x128xf32> -> vector<8x128xf32>
    %c0_3 = arith.constant 0 : index
    %c0_4 = arith.constant 0 : index
    %3 = vector.load %arg4[%c0_3, %c0_4] : memref<1x128xf32, #tpu.memory_space<vmem>>, vector<1x128xf32>
    %4 = vector.broadcast %3 : vector<1x128xf32> to vector<8x128xf32>
    %5 = arith.addf %2, %4 : vector<8x128xf32>
    %cst_5 = arith.constant 0.000000e+00 : f32
    %6 = vector.broadcast %cst_5 : f32 to vector<8x128xf32>
    %7 = arith.maximumf %5, %6 : vector<8x128xf32>
    %8 = arith.truncf %7 : vector<8x128xf32> to vector<8x128xbf16>
    %c0_6 = arith.constant 0 : index
    %c0_7 = arith.constant 0 : index
    %9 = vector.load %arg5[%c0_6, %c0_7] : memref<128x256xbf16, #tpu.memory_space<vmem>>, vector<128x256xbf16>
    %cst_8 = arith.constant dense<0.000000e+00> : vector<8x256xf32>
    %10 = tpu.matmul %8, %9, %cst_8 {dimension_numbers = #tpu.dot_dimension_numbers<[1], [0], [0], [1], [0, 0, 1, 1], [], []>} : vector<8x128xbf16>, vector<128x256xbf16>, vector<8x256xf32> -> vector<8x256xf32>
    %c0_9 = arith.constant 0 : index
    %c0_10 = arith.constant 0 : index
    %11 = vector.load %arg6[%c0_9, %c0_10] : memref<1x256xf32, #tpu.memory_space<vmem>>, vector<1x256xf32>
    %12 = vector.broadcast %11 : vector<1x256xf32> to vector<8x256xf32>
    %13 = arith.addf %10, %12 : vector<8x256xf32>
    %14 = vector.extract_strided_slice %13 {offsets = [0, 0], sizes = [8, 128], strides = [1, 1]} : vector<8x256xf32> to vector<8x128xf32>
    %15 = vector.extract_strided_slice %13 {offsets = [0, 128], sizes = [8, 128], strides = [1, 1]} : vector<8x256xf32> to vector<8x128xf32>
    %cst_11 = arith.constant 0.000000e+00 : f32
    %16 = vector.broadcast %cst_11 : f32 to vector<8x128xf32>
    %17 = arith.maximumf %15, %16 : vector<8x128xf32>
    %c0_12 = arith.constant 0 : index
    %c0_13 = arith.constant 0 : index
    %18 = vector.load %arg2[%c0_12, %c0_13] : memref<8x128xf32, #tpu.memory_space<vmem>>, vector<8x128xf32>
    %19 = arith.mulf %17, %18 : vector<8x128xf32>
    %20 = arith.addf %14, %19 : vector<8x128xf32>
    %21 = arith.truncf %20 : vector<8x128xf32> to vector<8x128xbf16>
    %c0_14 = arith.constant 0 : index
    %c0_15 = arith.constant 0 : index
    %22 = vector.load %arg7[%c0_14, %c0_15] : memref<128x128xbf16, #tpu.memory_space<vmem>>, vector<128x128xbf16>
    %cst_16 = arith.constant dense<0.000000e+00> : vector<8x128xf32>
    %23 = tpu.matmul %21, %22, %cst_16 {dimension_numbers = #tpu.dot_dimension_numbers<[1], [0], [0], [1], [0, 0, 1, 1], [], []>} : vector<8x128xbf16>, vector<128x128xbf16>, vector<8x128xf32> -> vector<8x128xf32>
    %c0_17 = arith.constant 0 : index
    %c0_18 = arith.constant 0 : index
    %24 = vector.load %arg8[%c0_17, %c0_18] : memref<1x128xf32, #tpu.memory_space<vmem>>, vector<1x128xf32>
    %25 = vector.broadcast %24 : vector<1x128xf32> to vector<8x128xf32>
    %26 = arith.addf %23, %25 : vector<8x128xf32>
    %cst_19 = arith.constant 0.000000e+00 : f32
    %27 = vector.broadcast %cst_19 : f32 to vector<8x128xf32>
    %28 = arith.maximumf %26, %27 : vector<8x128xf32>
    %29 = arith.truncf %28 : vector<8x128xf32> to vector<8x128xbf16>
    %c0_20 = arith.constant 0 : index
    %c0_21 = arith.constant 0 : index
    %30 = vector.load %arg9[%c0_20, %c0_21] : memref<128x128xbf16, #tpu.memory_space<vmem>>, vector<128x128xbf16>
    %cst_22 = arith.constant dense<0.000000e+00> : vector<8x128xf32>
    %31 = tpu.matmul %29, %30, %cst_22 {dimension_numbers = #tpu.dot_dimension_numbers<[1], [0], [0], [1], [0, 0, 1, 1], [], []>} : vector<8x128xbf16>, vector<128x128xbf16>, vector<8x128xf32> -> vector<8x128xf32>
    %c0_23 = arith.constant 0 : index
    %c0_24 = arith.constant 0 : index
    %32 = vector.load %arg10[%c0_23, %c0_24] : memref<1x128xf32, #tpu.memory_space<vmem>>, vector<1x128xf32>
    %33 = vector.broadcast %32 : vector<1x128xf32> to vector<8x128xf32>
    %34 = arith.addf %31, %33 : vector<8x128xf32>
    %cst_25 = arith.constant 0.000000e+00 : f32
    %35 = vector.broadcast %cst_25 : f32 to vector<8x128xf32>
    %36 = arith.maximumf %34, %35 : vector<8x128xf32>
    %37 = arith.truncf %36 : vector<8x128xf32> to vector<8x128xbf16>
    %c0_26 = arith.constant 0 : index
    %c0_27 = arith.constant 0 : index
    %38 = vector.load %arg11[%c0_26, %c0_27] : memref<128x128xbf16, #tpu.memory_space<vmem>>, vector<128x128xbf16>
    %cst_28 = arith.constant dense<0.000000e+00> : vector<8x128xf32>
    %39 = tpu.matmul %37, %38, %cst_28 {dimension_numbers = #tpu.dot_dimension_numbers<[1], [0], [0], [1], [0, 0, 1, 1], [], []>} : vector<8x128xbf16>, vector<128x128xbf16>, vector<8x128xf32> -> vector<8x128xf32>
    %c0_29 = arith.constant 0 : index
    %c0_30 = arith.constant 0 : index
    %40 = vector.load %arg12[%c0_29, %c0_30] : memref<1x128xf32, #tpu.memory_space<vmem>>, vector<1x128xf32>
    %41 = vector.broadcast %40 : vector<1x128xf32> to vector<8x128xf32>
    %42 = arith.addf %39, %41 : vector<8x128xf32>
    %cst_31 = arith.constant 0.000000e+00 : f32
    %43 = vector.broadcast %cst_31 : f32 to vector<8x128xf32>
    %44 = arith.maximumf %42, %43 : vector<8x128xf32>
    %c0_32 = arith.constant 0 : index
    %c0_33 = arith.constant 0 : index
    %45 = vector.load %arg13[%c0_32, %c0_33] : memref<8x128xf32, #tpu.memory_space<vmem>>, vector<8x128xf32>
    tpu.vector_store %arg13[%c0_32, %c0_33], %44 {strides = array<i32>} : memref<8x128xf32, #tpu.memory_space<vmem>>, vector<8x128xf32>,
    %c0_34 = arith.constant 0 : index
    %c0_35 = arith.constant 0 : index
    %46 = vector.load %arg14[%c0_34, %c0_35] : memref<8x128xf32, #tpu.memory_space<vmem>>, vector<8x128xf32>
    tpu.vector_store %arg14[%c0_34, %c0_35], %14 {strides = array<i32>} : memref<8x128xf32, #tpu.memory_space<vmem>>, vector<8x128xf32>,
    %c0_36 = arith.constant 0 : index
    %c0_37 = arith.constant 0 : index
    %47 = vector.load %arg15[%c0_36, %c0_37] : memref<8x128xf32, #tpu.memory_space<vmem>>, vector<8x128xf32>
    tpu.vector_store %arg15[%c0_36, %c0_37], %17 {strides = array<i32>} : memref<8x128xf32, #tpu.memory_space<vmem>>, vector<8x128xf32>,
    return
  }
  func.func @transform_0(%arg0: i32) -> (i32, i32) {
    %c0_i32 = arith.constant 0 : i32
    %c0_i32_0 = arith.constant 0 : i32
    return %arg0, %c0_i32 : i32, i32
  }
  func.func @transform_1(%arg0: i32) -> (i32, i32) {
    %c0_i32 = arith.constant 0 : i32
    %c0_i32_0 = arith.constant 0 : i32
    return %arg0, %c0_i32 : i32, i32
  }
  func.func @transform_2(%arg0: i32) -> (i32, i32) {
    %c0_i32 = arith.constant 0 : i32
    %c0_i32_0 = arith.constant 0 : i32
    %c0_i32_1 = arith.constant 0 : i32
    return %c0_i32, %c0_i32_0 : i32, i32
  }
  func.func @transform_3(%arg0: i32) -> (i32, i32) {
    %c0_i32 = arith.constant 0 : i32
    %c0_i32_0 = arith.constant 0 : i32
    %c0_i32_1 = arith.constant 0 : i32
    return %c0_i32, %c0_i32_0 : i32, i32
  }
  func.func @transform_4(%arg0: i32) -> (i32, i32) {
    %c0_i32 = arith.constant 0 : i32
    %c0_i32_0 = arith.constant 0 : i32
    %c0_i32_1 = arith.constant 0 : i32
    return %c0_i32, %c0_i32_0 : i32, i32
  }
  func.func @transform_5(%arg0: i32) -> (i32, i32) {
    %c0_i32 = arith.constant 0 : i32
    %c0_i32_0 = arith.constant 0 : i32
    %c0_i32_1 = arith.constant 0 : i32
    return %c0_i32, %c0_i32_0 : i32, i32
  }
  func.func @transform_6(%arg0: i32) -> (i32, i32) {
    %c0_i32 = arith.constant 0 : i32
    %c0_i32_0 = arith.constant 0 : i32
    %c0_i32_1 = arith.constant 0 : i32
    return %c0_i32, %c0_i32_0 : i32, i32
  }
  func.func @transform_7(%arg0: i32) -> (i32, i32) {
    %c0_i32 = arith.constant 0 : i32
    %c0_i32_0 = arith.constant 0 : i32
    %c0_i32_1 = arith.constant 0 : i32
    return %c0_i32, %c0_i32_0 : i32, i32
  }
  func.func @transform_8(%arg0: i32) -> (i32, i32) {
    %c0_i32 = arith.constant 0 : i32
    %c0_i32_0 = arith.constant 0 : i32
    %c0_i32_1 = arith.constant 0 : i32
    return %c0_i32, %c0_i32_0 : i32, i32
  }
  func.func @transform_9(%arg0: i32) -> (i32, i32) {
    %c0_i32 = arith.constant 0 : i32
    %c0_i32_0 = arith.constant 0 : i32
    %c0_i32_1 = arith.constant 0 : i32
    return %c0_i32, %c0_i32_0 : i32, i32
  }
  func.func @transform_10(%arg0: i32) -> (i32, i32) {
    %c0_i32 = arith.constant 0 : i32
    %c0_i32_0 = arith.constant 0 : i32
    %c0_i32_1 = arith.constant 0 : i32
    return %c0_i32, %c0_i32_0 : i32, i32
  }
  func.func @transform_11(%arg0: i32) -> (i32, i32) {
    %c0_i32 = arith.constant 0 : i32
    %c0_i32_0 = arith.constant 0 : i32
    %c0_i32_1 = arith.constant 0 : i32
    return %c0_i32, %c0_i32_0 : i32, i32
  }
  func.func @transform_12(%arg0: i32) -> (i32, i32) {
    %c0_i32 = arith.constant 0 : i32
    %c0_i32_0 = arith.constant 0 : i32
    return %arg0, %c0_i32 : i32, i32
  }
  func.func @transform_13(%arg0: i32) -> (i32, i32) {
    %c0_i32 = arith.constant 0 : i32
    %c0_i32_0 = arith.constant 0 : i32
    return %arg0, %c0_i32 : i32, i32
  }
  func.func @transform_14(%arg0: i32) -> (i32, i32) {
    %c0_i32 = arith.constant 0 : i32
    %c0_i32_0 = arith.constant 0 : i32
    return %arg0, %c0_i32 : i32, i32
  }
}

</mosaic_0001>

<llo_original>
// kernel: tpu_custom_call.1
$region0: #{tpu_custom_call.1}
  #allocation0 [shape = 'u32[]', space=smem, size = 0x4, offset = 0x4, fixed_abs, tag = 'smem constant byte address 0x4 - core index']
  #allocation1 [shape = 'u32[144,128]{1,0:T(1,128)}', space=vmem, size = 0x12000, scoped, tag = 'internal scratch']
  %s0 = inlined_call_operand.hbm [shape: bf16[8,128], index: 0, kind: input, shape index: {}]
  %s1 = inlined_call_operand.hbm [shape: f32[8,128], index: 1, kind: input, shape index: {}]
  %s2 = inlined_call_operand.hbm [shape: bf16[128,128], index: 2, kind: input, shape index: {}]
  %s3 = inlined_call_operand.vmem [shape: f32[1,128], index: 3, kind: input, shape index: {}]
  %s4 = inlined_call_operand.hbm [shape: bf16[128,256], index: 4, kind: input, shape index: {}]
  %s5 = inlined_call_operand.vmem [shape: f32[1,256], index: 5, kind: input, shape index: {}]
  %s6 = inlined_call_operand.hbm [shape: bf16[128,128], index: 6, kind: input, shape index: {}]
  %s7 = inlined_call_operand.vmem [shape: f32[1,128], index: 7, kind: input, shape index: {}]
  %s8 = inlined_call_operand.hbm [shape: bf16[128,128], index: 8, kind: input, shape index: {}]
  %s9 = inlined_call_operand.vmem [shape: f32[1,128], index: 9, kind: input, shape index: {}]
  %s10 = inlined_call_operand.hbm [shape: bf16[128,128], index: 10, kind: input, shape index: {}]
  %s11 = inlined_call_operand.vmem [shape: f32[1,128], index: 11, kind: input, shape index: {}]
  %s12 = inlined_call_operand.hbm [shape: f32[8,128], index: 12, kind: output, shape index: {0}]
  %s13 = inlined_call_operand.hbm [shape: f32[8,128], index: 13, kind: output, shape index: {1}]
  %s14 = inlined_call_operand.hbm [shape: f32[8,128], index: 14, kind: output, shape index: {2}]
  %15 = xla_tuple %s12, %s13, %s14
  %s16 = sld [smem:[#allocation0]]
  $region102: #{tpu_custom_call.1} parent=0
    _
  %s18 = ssub.s32 1, %s16
  %s19 = scalar_select 0, %s18, %s16
  $region1: #{tpu_custom_call.1} parent=0
    #allocation2 [shape = 'u8[2048]{0}', space=vmem, size = 0x800, scoped, tag = 'input window, operand 0, single buffered']
    #allocation3 [shape = 's32[1]{0}', space=sflag, size = 0x4, scoped, tag = 'scoped memory for tpu_custom_call.1']
    #allocation4 [shape = 's32[1]{0}', space=sflag, size = 0x4, scoped, tag = 'scoped memory for tpu_custom_call.1']
    #allocation5 [shape = 'u8[4096]{0}', space=vmem, size = 0x1000, scoped, tag = 'input window, operand 1, single buffered']
    #allocation6 [shape = 's32[1]{0}', space=sflag, size = 0x4, scoped, tag = 'scoped memory for tpu_custom_call.1']
    #allocation7 [shape = 'u8[32768]{0}', space=vmem, size = 0x8000, scoped, tag = 'input window, operand 2, single buffered']
    #allocation8 [shape = 'u8[65536]{0}', space=vmem, size = 0x10000, scoped, tag = 'input window, operand 4, single buffered']
    #allocation9 [shape = 's32[1]{0}', space=sflag, size = 0x4, scoped, tag = 'scoped memory for tpu_custom_call.1']
    #allocation10 [shape = 'u8[32768]{0}', space=vmem, size = 0x8000, scoped, tag = 'input window, operand 6, single buffered']
    #allocation11 [shape = 'u8[32768]{0}', space=vmem, size = 0x8000, scoped, tag = 'input window, operand 8, single buffered']
    #allocation12 [shape = 's32[1]{0}', space=sflag, size = 0x4, scoped, tag = 'scoped memory for tpu_custom_call.1']
    #allocation13 [shape = 'u8[32768]{0}', space=vmem, size = 0x8000, scoped, tag = 'input window, operand 10, single buffered']
    #allocation14 [shape = 'u8[4096]{0}', space=vmem, size = 0x1000, scoped, tag = 'output window, operand 0, single buffered']
    #allocation15 [shape = 'u8[4096]{0}', space=vmem, size = 0x1000, scoped, tag = 'output window, operand 1, single buffered']
    #allocation16 [shape = 's32[1]{0}', space=sflag, size = 0x4, scoped, tag = 'scoped memory for tpu_custom_call.1']
    #allocation17 [shape = 'u8[4096]{0}', space=vmem, size = 0x1000, scoped, tag = 'output window, operand 2, single buffered']
    %20 = vsyncpa [#allocation3], 0
    %21 = vsyncpa [#allocation6], 0
    %22 = vsyncpa [#allocation9], 0
    %23 = vsyncpa [#allocation12], 0
    %24 = vsyncpa [#allocation4], 0
    %25 = vsyncpa [#allocation16], 0
    // Predicated region
    $region2: #{tpu_custom_call.1} parent=1 // pred_check
      _
    $region3: #{tpu_custom_call.1} parent=1 // pred_check_branch
      %27 = sbr.rel (0) target = $region5
    $region4: #{tpu_custom_call.1} parent=1 // pred_region
      %s29 = ssub.s32 64, 64
      %30 = vsyncadd [#allocation3], %s29
      %s32 = sshll.u32 [#allocation2], 4
      %s33 = int_to_ptr.vmem [resolvable:$true] %s32
      %35 = dma.hbm_to_vmem [thread:$0]  %s0, 64, %s33, [#allocation3]
    $region5: #{tpu_custom_call.1} parent=1 // pred_fallthru
      _
    // Predicated region
    $region6: #{tpu_custom_call.1} parent=1 // pred_check
      _
    $region7: #{tpu_custom_call.1} parent=1 // pred_check_branch
      %37 = sbr.rel (0) target = $region9
    $region8: #{tpu_custom_call.1} parent=1 // pred_region
      %s39 = ssub.s32 128, 128
      %40 = vsyncadd [#allocation6], %s39
      %s42 = sshll.u32 [#allocation5], 4
      %s43 = int_to_ptr.vmem [resolvable:$true] %s42
      %45 = dma.hbm_to_vmem [thread:$0]  %s1, 128, %s43, [#allocation6]
    $region9: #{tpu_custom_call.1} parent=1 // pred_fallthru
      _
    // Predicated region
    $region10: #{tpu_custom_call.1} parent=1 // pred_check
      _
    $region11: #{tpu_custom_call.1} parent=1 // pred_check_branch
      %47 = sbr.rel (0) target = $region13
    $region12: #{tpu_custom_call.1} parent=1 // pred_region
      %s49 = ssub.s32 1024, 1024
      %50 = vsyncadd [#allocation6], %s49
      %s51 = sshll.u32 [#allocation7], 4
      %s52 = int_to_ptr.vmem [resolvable:$true] %s51
      %57 = dma.hbm_to_vmem [thread:$0]  %s2, 1024, %s52, [#allocation6], 64, 64, 4
    $region13: #{tpu_custom_call.1} parent=1 // pred_fallthru
      _
    // Predicated region
    $region14: #{tpu_custom_call.1} parent=1 // pred_check
      _
    $region15: #{tpu_custom_call.1} parent=1 // pred_check_branch
      %59 = sbr.rel (0) target = $region17
    $region16: #{tpu_custom_call.1} parent=1 // pred_region
      _
    $region17: #{tpu_custom_call.1} parent=1 // pred_fallthru
      _
    // Predicated region
    $region18: #{tpu_custom_call.1} parent=1 // pred_check
      _
    $region19: #{tpu_custom_call.1} parent=1 // pred_check_branch
      %61 = sbr.rel (0) target = $region21
    $region20: #{tpu_custom_call.1} parent=1 // pred_region
      %s63 = ssub.s32 2048, 2048
      %64 = vsyncadd [#allocation9], %s63
      %s65 = sshll.u32 [#allocation8], 4
      %s66 = int_to_ptr.vmem [resolvable:$true] %s65
      %71 = dma.hbm_to_vmem [thread:$0]  %s4, 2048, %s66, [#allocation9], 128, 128, 8
    $region21: #{tpu_custom_call.1} parent=1 // pred_fallthru
      _
    // Predicated region
    $region22: #{tpu_custom_call.1} parent=1 // pred_check
      _
    $region23: #{tpu_custom_call.1} parent=1 // pred_check_branch
      %73 = sbr.rel (0) target = $region25
    $region24: #{tpu_custom_call.1} parent=1 // pred_region
      _
    $region25: #{tpu_custom_call.1} parent=1 // pred_fallthru
      _
    // Predicated region
    $region26: #{tpu_custom_call.1} parent=1 // pred_check
      _
    $region27: #{tpu_custom_call.1} parent=1 // pred_check_branch
      %75 = sbr.rel (0) target = $region29
    $region28: #{tpu_custom_call.1} parent=1 // pred_region
      %s77 = ssub.s32 1024, 1024
      %78 = vsyncadd [#allocation9], %s77
      %s79 = sshll.u32 [#allocation10], 4
      %s80 = int_to_ptr.vmem [resolvable:$true] %s79
      %85 = dma.hbm_to_vmem [thread:$0]  %s6, 1024, %s80, [#allocation9], 64, 64, 4
    $region29: #{tpu_custom_call.1} parent=1 // pred_fallthru
      _
    // Predicated region
    $region30: #{tpu_custom_call.1} parent=1 // pred_check
      _
    $region31: #{tpu_custom_call.1} parent=1 // pred_check_branch
      %87 = sbr.rel (0) target = $region33
    $region32: #{tpu_custom_call.1} parent=1 // pred_region
      _
    $region33: #{tpu_custom_call.1} parent=1 // pred_fallthru
      _
    // Predicated region
    $region34: #{tpu_custom_call.1} parent=1 // pred_check
      _
    $region35: #{tpu_custom_call.1} parent=1 // pred_check_branch
      %89 = sbr.rel (0) target = $region37
    $region36: #{tpu_custom_call.1} parent=1 // pred_region
      %s91 = ssub.s32 1024, 1024
      %92 = vsyncadd [#allocation12], %s91
      %s93 = sshll.u32 [#allocation11], 4
      %s94 = int_to_ptr.vmem [resolvable:$true] %s93
      %99 = dma.hbm_to_vmem [thread:$0]  %s8, 1024, %s94, [#allocation12], 64, 64, 4
    $region37: #{tpu_custom_call.1} parent=1 // pred_fallthru
      _
    // Predicated region
    $region38: #{tpu_custom_call.1} parent=1 // pred_check
      _
    $region39: #{tpu_custom_call.1} parent=1 // pred_check_branch
      %101 = sbr.rel (0) target = $region41
    $region40: #{tpu_custom_call.1} parent=1 // pred_region
      _
    $region41: #{tpu_custom_call.1} parent=1 // pred_fallthru
      _
    // Predicated region
    $region42: #{tpu_custom_call.1} parent=1 // pred_check
      _
    $region43: #{tpu_custom_call.1} parent=1 // pred_check_branch
      %103 = sbr.rel (0) target = $region45
    $region44: #{tpu_custom_call.1} parent=1 // pred_region
      %s105 = ssub.s32 1024, 1024
      %106 = vsyncadd [#allocation12], %s105
      %s107 = sshll.u32 [#allocation13], 4
      %s108 = int_to_ptr.vmem [resolvable:$true] %s107
      %113 = dma.hbm_to_vmem [thread:$0]  %s10, 1024, %s108, [#allocation12], 64, 64, 4
    $region45: #{tpu_custom_call.1} parent=1 // pred_fallthru
      _
    // Predicated region
    $region46: #{tpu_custom_call.1} parent=1 // pred_check
      _
    $region47: #{tpu_custom_call.1} parent=1 // pred_check_branch
      %115 = sbr.rel (0) target = $region49
    $region48: #{tpu_custom_call.1} parent=1 // pred_region
      _
    $region49: #{tpu_custom_call.1} parent=1 // pred_fallthru
      _
    // Predicated region
    $region50: #{tpu_custom_call.1} parent=1 // pred_check
      _
    $region51: #{tpu_custom_call.1} parent=1 // pred_check_branch
      %117 = sbr.rel (0) target = $region53
    $region52: #{tpu_custom_call.1} parent=1 // pred_region
      %118 = dma.done [#allocation3], 64
    $region53: #{tpu_custom_call.1} parent=1 // pred_fallthru
      _
    // Predicated region
    $region54: #{tpu_custom_call.1} parent=1 // pred_check
      _
    $region55: #{tpu_custom_call.1} parent=1 // pred_check_branch
      %120 = sbr.rel (0) target = $region57
    $region56: #{tpu_custom_call.1} parent=1 // pred_region
      %121 = dma.done [#allocation6], 128
    $region57: #{tpu_custom_call.1} parent=1 // pred_fallthru
      _
    // Predicated region
    $region58: #{tpu_custom_call.1} parent=1 // pred_check
      _
    $region59: #{tpu_custom_call.1} parent=1 // pred_check_branch
      %123 = sbr.rel (0) target = $region61
    $region60: #{tpu_custom_call.1} parent=1 // pred_region
      %124 = dma.done [#allocation6], 1024
    $region61: #{tpu_custom_call.1} parent=1 // pred_fallthru
      _
    // Predicated region
    $region62: #{tpu_custom_call.1} parent=1 // pred_check
      _
    $region63: #{tpu_custom_call.1} parent=1 // pred_check_branch
      %126 = sbr.rel (0) target = $region65
    $region64: #{tpu_custom_call.1} parent=1 // pred_region
      %127 = dma.done [#allocation9], 2048
    $region65: #{tpu_custom_call.1} parent=1 // pred_fallthru
      _
    // Predicated region
    $region66: #{tpu_custom_call.1} parent=1 // pred_check
      _
    $region67: #{tpu_custom_call.1} parent=1 // pred_check_branch
      %129 = sbr.rel (0) target = $region69
    $region68: #{tpu_custom_call.1} parent=1 // pred_region
      %130 = dma.done [#allocation9], 1024
    $region69: #{tpu_custom_call.1} parent=1 // pred_fallthru
      _
    // Predicated region
    $region70: #{tpu_custom_call.1} parent=1 // pred_check
      _
    $region71: #{tpu_custom_call.1} parent=1 // pred_check_branch
      %132 = sbr.rel (0) target = $region73
    $region72: #{tpu_custom_call.1} parent=1 // pred_region
      %133 = dma.done [#allocation12], 1024
    $region73: #{tpu_custom_call.1} parent=1 // pred_fallthru
      _
    // Predicated region
    $region74: #{tpu_custom_call.1} parent=1 // pred_check
      _
    $region75: #{tpu_custom_call.1} parent=1 // pred_check_branch
      %135 = sbr.rel (0) target = $region77
    $region76: #{tpu_custom_call.1} parent=1 // pred_region
      %136 = dma.done [#allocation12], 1024
    $region77: #{tpu_custom_call.1} parent=1 // pred_fallthru
      _
    %v138 = vld [vmem:[#allocation2] sm:$0xf]
    %v139 = vld [vmem:[#allocation7] sm:$0xf]
    %v140 = vld [vmem:[#allocation7 + $0x4] sm:$0xf]
    %v141 = vld [vmem:[#allocation7 + $0x8] sm:$0xf]
    %v142 = vld [vmem:[#allocation7 + $0xc] sm:$0xf]
    %v143 = vld [vmem:[#allocation7 + $0x10] sm:$0xf]
    %v144 = vld [vmem:[#allocation7 + $0x14] sm:$0xf]
    %v145 = vld [vmem:[#allocation7 + $0x18] sm:$0xf]
    %v146 = vld [vmem:[#allocation7 + $0x1c] sm:$0xf]
    %v147 = vld [vmem:[#allocation7 + $0x20] sm:$0xf]
    %v148 = vld [vmem:[#allocation7 + $0x24] sm:$0xf]
    %v149 = vld [vmem:[#allocation7 + $0x28] sm:$0xf]
    %v150 = vld [vmem:[#allocation7 + $0x2c] sm:$0xf]
    %v151 = vld [vmem:[#allocation7 + $0x30] sm:$0xf]
    %v152 = vld [vmem:[#allocation7 + $0x34] sm:$0xf]
    %v153 = vld [vmem:[#allocation7 + $0x38] sm:$0xf]
    %v154 = vld [vmem:[#allocation7 + $0x3c] sm:$0xf]
    %v155 = vld [vmem:[%s3] sm:$0x1]
    %v157 = vlaneseq
    %v158 = vshrl.u32 %v157, 7
    %v159 = vsub.s32 0, %v158
    %v160 = vrot.slane %v155, %v159
    %v178 = vunpack.c.l.b16 %v139
    %v179 = vunpack.c.l.b16 %v140
    %v180 = vunpack.c.l.b16 %v141
    %v181 = vunpack.c.l.b16 %v142
    %v182 = vunpack.c.l.b16 %v143
    %v183 = vunpack.c.l.b16 %v144
    %v184 = vunpack.c.l.b16 %v145
    %v185 = vunpack.c.l.b16 %v146
    %v186 = vunpack.c.l.b16 %v147
    %v187 = vunpack.c.l.b16 %v148
    %v188 = vunpack.c.l.b16 %v149
    %v189 = vunpack.c.l.b16 %v150
    %v190 = vunpack.c.l.b16 %v151
    %v191 = vunpack.c.l.b16 %v152
    %v192 = vunpack.c.l.b16 %v153
    %v193 = vunpack.c.l.b16 %v154
    %v194 = vpack.c.b16 %v179, %v178
    %v195 = vpack.c.b16 %v181, %v180
    %v196 = vpack.c.b16 %v183, %v182
    %v197 = vpack.c.b16 %v185, %v184
    %v198 = vpack.c.b16 %v187, %v186
    %v199 = vpack.c.b16 %v189, %v188
    %v200 = vpack.c.b16 %v191, %v190
    %v201 = vpack.c.b16 %v193, %v192
    %210 = vmatprep.subr.bf16.mxu0 0
    %211 = vmatpush1.bf16.msra.mxu0 %v201
    %212 = vmatprep.subr.bf16.mxu0 0
    %213 = vmatpush1.bf16.msra.mxu0 %v200
    %214 = vmatprep.subr.bf16.mxu0 0
    %215 = vmatpush1.bf16.msra.mxu0 %v199
    %216 = vmatprep.subr.bf16.mxu0 0
    %217 = vmatpush1.bf16.msra.mxu0 %v198
    %218 = vmatprep.subr.bf16.mxu0 0
    %219 = vmatpush1.bf16.msra.mxu0 %v197
    %220 = vmatprep.subr.bf16.mxu0 0
    %221 = vmatpush1.bf16.msra.mxu0 %v196
    %222 = vmatprep.subr.bf16.mxu0 0
    %223 = vmatpush1.bf16.msra.mxu0 %v195
    %224 = vmatprep.subr.bf16.mxu0 0
    %225 = vmatpush1.bf16.msra.mxu0 %v194
    %226 = vmatprep.subr.bf16.mxu0 0
    %227 = vmatpush2.bf16.msra.mxu0 0
    %228 = vmatprep.subr.bf16.mxu0 0
    %229 = vmatpush2.bf16.msra.mxu0 0
    %230 = vmatprep.subr.bf16.mxu0 0
    %231 = vmatpush2.bf16.msra.mxu0 0
    %232 = vmatprep.subr.bf16.mxu0 0
    %233 = vmatpush2.bf16.msra.mxu0 0
    %234 = vmatprep.subr.bf16.mxu0 0
    %235 = vmatpush2.bf16.msra.mxu0 0
    %236 = vmatprep.subr.bf16.mxu0 0
    %237 = vmatpush2.bf16.msra.mxu0 0
    %238 = vmatprep.subr.bf16.mxu0 0
    %239 = vmatpush2.bf16.msra.mxu0 0
    %240 = vmatprep.subr.bf16.mxu0 0
    %241 = vmatpush2.bf16.msra.mxu0 0
    %242 = vmatprep.mubr.bf16.mxu0 0
    %243 = vmatmul.mubr.bf16.gmra.mxu0 %v138
    %v244 = vpop.f32.mrf.mxu0
    %v245 = vadd.f32 %v160, %v244
    %v246 = vpop.f32.mrf.mxu0
    %v247 = vpop.f32.mrf.mxu0
    %v248 = vpop.f32.mrf.mxu0
    %249 = vdwg.mxu0
    %v250 = vmax.f32 %v245, 0.0
    %v251 = vpack.c.bf16 %v250, %v250
    %v252 = vld [vmem:[#allocation8] sm:$0xff]
    %v253 = vld [vmem:[#allocation8 + $0x8] sm:$0xff]
    %v254 = vld [vmem:[#allocation8 + $0x10] sm:$0xff]
    %v255 = vld [vmem:[#allocation8 + $0x18] sm:$0xff]
    %v256 = vld [vmem:[#allocation8 + $0x20] sm:$0xff]
    %v257 = vld [vmem:[#allocation8 + $0x28] sm:$0xff]
    %v258 = vld [vmem:[#allocation8 + $0x30] sm:$0xff]
    %v259 = vld [vmem:[#allocation8 + $0x38] sm:$0xff]
    %v260 = vld [vmem:[#allocation8 + $0x40] sm:$0xff]
    %v261 = vld [vmem:[#allocation8 + $0x48] sm:$0xff]
    %v262 = vld [vmem:[#allocation8 + $0x50] sm:$0xff]
    %v263 = vld [vmem:[#allocation8 + $0x58] sm:$0xff]
    %v264 = vld [vmem:[#allocation8 + $0x60] sm:$0xff]
    %v265 = vld [vmem:[#allocation8 + $0x68] sm:$0xff]
    %v266 = vld [vmem:[#allocation8 + $0x70] sm:$0xff]
    %v267 = vld [vmem:[#allocation8 + $0x78] sm:$0xff]
    %v268 = vld [vmem:[%s5] sm:$0x3]
    %v270 = vlaneseq
    %v271 = vshrl.u32 %v270, 7
    %v272 = vsub.s32 0, %v271
    %v273 = vrot.slane %v268, %v272
    %v274 = vlaneseq
    %v275 = vshrl.u32 %v274, 7
    %v276 = vsub.s32 1, %v275
    %v277 = vrot.slane %v268, %v276
    %v296 = vunpack.c.l.b16 %v252
    %v297 = vunpack.c.h.b16 %v252
    %v298 = vunpack.c.l.b16 %v253
    %v299 = vunpack.c.h.b16 %v253
    %v300 = vunpack.c.l.b16 %v254
    %v301 = vunpack.c.h.b16 %v254
    %v302 = vunpack.c.l.b16 %v255
    %v303 = vunpack.c.h.b16 %v255
    %v304 = vunpack.c.l.b16 %v256
    %v305 = vunpack.c.h.b16 %v256
    %v306 = vunpack.c.l.b16 %v257
    %v307 = vunpack.c.h.b16 %v257
    %v308 = vunpack.c.l.b16 %v258
    %v309 = vunpack.c.h.b16 %v258
    %v310 = vunpack.c.l.b16 %v259
    %v311 = vunpack.c.h.b16 %v259
    %v312 = vunpack.c.l.b16 %v260
    %v313 = vunpack.c.h.b16 %v260
    %v314 = vunpack.c.l.b16 %v261
    %v315 = vunpack.c.h.b16 %v261
    %v316 = vunpack.c.l.b16 %v262
    %v317 = vunpack.c.h.b16 %v262
    %v318 = vunpack.c.l.b16 %v263
    %v319 = vunpack.c.h.b16 %v263
    %v320 = vunpack.c.l.b16 %v264
    %v321 = vunpack.c.h.b16 %v264
    %v322 = vunpack.c.l.b16 %v265
    %v323 = vunpack.c.h.b16 %v265
    %v324 = vunpack.c.l.b16 %v266
    %v325 = vunpack.c.h.b16 %v266
    %v326 = vunpack.c.l.b16 %v267
    %v327 = vunpack.c.h.b16 %v267
    %v328 = vpack.c.b16 %v298, %v296
    %v329 = vpack.c.b16 %v299, %v297
    %v330 = vpack.c.b16 %v302, %v300
    %v331 = vpack.c.b16 %v303, %v301
    %v332 = vpack.c.b16 %v306, %v304
    %v333 = vpack.c.b16 %v307, %v305
    %v334 = vpack.c.b16 %v310, %v308
    %v335 = vpack.c.b16 %v311, %v309
    %v336 = vpack.c.b16 %v314, %v312
    %v337 = vpack.c.b16 %v315, %v313
    %v338 = vpack.c.b16 %v318, %v316
    %v339 = vpack.c.b16 %v319, %v317
    %v340 = vpack.c.b16 %v322, %v320
    %v341 = vpack.c.b16 %v323, %v321
    %v342 = vpack.c.b16 %v326, %v324
    %v343 = vpack.c.b16 %v327, %v325
    %360 = vmatprep.subr.bf16.mxu0 %v343
    %361 = vmatpush1.bf16.msra.mxu0 %v342
    %362 = vmatprep.subr.bf16.mxu0 %v341
    %363 = vmatpush1.bf16.msra.mxu0 %v340
    %364 = vmatprep.subr.bf16.mxu0 %v339
    %365 = vmatpush1.bf16.msra.mxu0 %v338
    %366 = vmatprep.subr.bf16.mxu0 %v337
    %367 = vmatpush1.bf16.msra.mxu0 %v336
    %368 = vmatprep.subr.bf16.mxu0 %v335
    %369 = vmatpush1.bf16.msra.mxu0 %v334
    %370 = vmatprep.subr.bf16.mxu0 %v333
    %371 = vmatpush1.bf16.msra.mxu0 %v332
    %372 = vmatprep.subr.bf16.mxu0 %v331
    %373 = vmatpush1.bf16.msra.mxu0 %v330
    %374 = vmatprep.subr.bf16.mxu0 %v329
    %375 = vmatpush1.bf16.msra.mxu0 %v328
    %376 = vmatprep.subr.bf16.mxu0 0
    %377 = vmatpush2.bf16.msra.mxu0 0
    %378 = vmatprep.subr.bf16.mxu0 0
    %379 = vmatpush2.bf16.msra.mxu0 0
    %380 = vmatprep.subr.bf16.mxu0 0
    %381 = vmatpush2.bf16.msra.mxu0 0
    %382 = vmatprep.subr.bf16.mxu0 0
    %383 = vmatpush2.bf16.msra.mxu0 0
    %384 = vmatprep.subr.bf16.mxu0 0
    %385 = vmatpush2.bf16.msra.mxu0 0
    %386 = vmatprep.subr.bf16.mxu0 0
    %387 = vmatpush2.bf16.msra.mxu0 0
    %388 = vmatprep.subr.bf16.mxu0 0
    %389 = vmatpush2.bf16.msra.mxu0 0
    %390 = vmatprep.subr.bf16.mxu0 0
    %391 = vmatpush2.bf16.msra.mxu0 0
    %392 = vmatprep.mubr.bf16.mxu0 0
    %393 = vmatmul.mubr.bf16.gmra.mxu0 %v251
    %v394 = vpop.f32.mrf.mxu0
    %v395 = vadd.f32 %v273, %v394
    %v396 = vpop.f32.mrf.mxu0
    %v397 = vadd.f32 %v277, %v396
    %v398 = vpop.f32.mrf.mxu0
    %v399 = vpop.f32.mrf.mxu0
    %400 = vdwg.mxu0
    %v401 = vmax.f32 %v397, 0.0
    %v402 = vld [vmem:[#allocation5] sm:$0xff]
    %v403 = vmul.f32 %v401, %v402
    %v404 = vadd.f32 %v395, %v403
    %v405 = vpack.c.bf16 %v404, %v404
    %v406 = vld [vmem:[#allocation10] sm:$0xf]
    %v407 = vld [vmem:[#allocation10 + $0x4] sm:$0xf]
    %v408 = vld [vmem:[#allocation10 + $0x8] sm:$0xf]
    %v409 = vld [vmem:[#allocation10 + $0xc] sm:$0xf]
    %v410 = vld [vmem:[#allocation10 + $0x10] sm:$0xf]
    %v411 = vld [vmem:[#allocation10 + $0x14] sm:$0xf]
    %v412 = vld [vmem:[#allocation10 + $0x18] sm:$0xf]
    %v413 = vld [vmem:[#allocation10 + $0x1c] sm:$0xf]
    %v414 = vld [vmem:[#allocation10 + $0x20] sm:$0xf]
    %v415 = vld [vmem:[#allocation10 + $0x24] sm:$0xf]
    %v416 = vld [vmem:[#allocation10 + $0x28] sm:$0xf]
    %v417 = vld [vmem:[#allocation10 + $0x2c] sm:$0xf]
    %v418 = vld [vmem:[#allocation10 + $0x30] sm:$0xf]
    %v419 = vld [vmem:[#allocation10 + $0x34] sm:$0xf]
    %v420 = vld [vmem:[#allocation10 + $0x38] sm:$0xf]
    %v421 = vld [vmem:[#allocation10 + $0x3c] sm:$0xf]
    %v422 = vld [vmem:[%s7] sm:$0x1]
    %v424 = vlaneseq
    %v425 = vshrl.u32 %v424, 7
    %v426 = vsub.s32 0, %v425
    %v427 = vrot.slane %v422, %v426
    %v445 = vunpack.c.l.b16 %v406
    %v446 = vunpack.c.l.b16 %v407
    %v447 = vunpack.c.l.b16 %v408
    %v448 = vunpack.c.l.b16 %v409
    %v449 = vunpack.c.l.b16 %v410
    %v450 = vunpack.c.l.b16 %v411
    %v451 = vunpack.c.l.b16 %v412
    %v452 = vunpack.c.l.b16 %v413
    %v453 = vunpack.c.l.b16 %v414
    %v454 = vunpack.c.l.b16 %v415
    %v455 = vunpack.c.l.b16 %v416
    %v456 = vunpack.c.l.b16 %v417
    %v457 = vunpack.c.l.b16 %v418
    %v458 = vunpack.c.l.b16 %v419
    %v459 = vunpack.c.l.b16 %v420
    %v460 = vunpack.c.l.b16 %v421
    %v461 = vpack.c.b16 %v446, %v445
    %v462 = vpack.c.b16 %v448, %v447
    %v463 = vpack.c.b16 %v450, %v449
    %v464 = vpack.c.b16 %v452, %v451
    %v465 = vpack.c.b16 %v454, %v453
    %v466 = vpack.c.b16 %v456, %v455
    %v467 = vpack.c.b16 %v458, %v457
    %v468 = vpack.c.b16 %v460, %v459
    %477 = vmatprep.subr.bf16.mxu0 0
    %478 = vmatpush1.bf16.msra.mxu0 %v468
    %479 = vmatprep.subr.bf16.mxu0 0
    %480 = vmatpush1.bf16.msra.mxu0 %v467
    %481 = vmatprep.subr.bf16.mxu0 0
    %482 = vmatpush1.bf16.msra.mxu0 %v466
    %483 = vmatprep.subr.bf16.mxu0 0
    %484 = vmatpush1.bf16.msra.mxu0 %v465
    %485 = vmatprep.subr.bf16.mxu0 0
    %486 = vmatpush1.bf16.msra.mxu0 %v464
    %487 = vmatprep.subr.bf16.mxu0 0
    %488 = vmatpush1.bf16.msra.mxu0 %v463
    %489 = vmatprep.subr.bf16.mxu0 0
    %490 = vmatpush1.bf16.msra.mxu0 %v462
    %491 = vmatprep.subr.bf16.mxu0 0
    %492 = vmatpush1.bf16.msra.mxu0 %v461
    %493 = vmatprep.subr.bf16.mxu0 0
    %494 = vmatpush2.bf16.msra.mxu0 0
    %495 = vmatprep.subr.bf16.mxu0 0
    %496 = vmatpush2.bf16.msra.mxu0 0
    %497 = vmatprep.subr.bf16.mxu0 0
    %498 = vmatpush2.bf16.msra.mxu0 0
    %499 = vmatprep.subr.bf16.mxu0 0
    %500 = vmatpush2.bf16.msra.mxu0 0
    %501 = vmatprep.subr.bf16.mxu0 0
    %502 = vmatpush2.bf16.msra.mxu0 0
    %503 = vmatprep.subr.bf16.mxu0 0
    %504 = vmatpush2.bf16.msra.mxu0 0
    %505 = vmatprep.subr.bf16.mxu0 0
    %506 = vmatpush2.bf16.msra.mxu0 0
    %507 = vmatprep.subr.bf16.mxu0 0
    %508 = vmatpush2.bf16.msra.mxu0 0
    %509 = vmatprep.mubr.bf16.mxu0 0
    %510 = vmatmul.mubr.bf16.gmra.mxu0 %v405
    %v511 = vpop.f32.mrf.mxu0
    %v512 = vadd.f32 %v427, %v511
    %v513 = vpop.f32.mrf.mxu0
    %v514 = vpop.f32.mrf.mxu0
    %v515 = vpop.f32.mrf.mxu0
    %516 = vdwg.mxu0
    %v517 = vmax.f32 %v512, 0.0
    %v518 = vpack.c.bf16 %v517, %v517
    %v519 = vld [vmem:[#allocation11] sm:$0xf]
    %v520 = vld [vmem:[#allocation11 + $0x4] sm:$0xf]
    %v521 = vld [vmem:[#allocation11 + $0x8] sm:$0xf]
    %v522 = vld [vmem:[#allocation11 + $0xc] sm:$0xf]
    %v523 = vld [vmem:[#allocation11 + $0x10] sm:$0xf]
    %v524 = vld [vmem:[#allocation11 + $0x14] sm:$0xf]
    %v525 = vld [vmem:[#allocation11 + $0x18] sm:$0xf]
    %v526 = vld [vmem:[#allocation11 + $0x1c] sm:$0xf]
    %v527 = vld [vmem:[#allocation11 + $0x20] sm:$0xf]
    %v528 = vld [vmem:[#allocation11 + $0x24] sm:$0xf]
    %v529 = vld [vmem:[#allocation11 + $0x28] sm:$0xf]
    %v530 = vld [vmem:[#allocation11 + $0x2c] sm:$0xf]
    %v531 = vld [vmem:[#allocation11 + $0x30] sm:$0xf]
    %v532 = vld [vmem:[#allocation11 + $0x34] sm:$0xf]
    %v533 = vld [vmem:[#allocation11 + $0x38] sm:$0xf]
    %v534 = vld [vmem:[#allocation11 + $0x3c] sm:$0xf]
    %v535 = vld [vmem:[%s9] sm:$0x1]
    %v537 = vlaneseq
    %v538 = vshrl.u32 %v537, 7
    %v539 = vsub.s32 0, %v538
    %v540 = vrot.slane %v535, %v539
    %v558 = vunpack.c.l.b16 %v519
    %v559 = vunpack.c.l.b16 %v520
    %v560 = vunpack.c.l.b16 %v521
    %v561 = vunpack.c.l.b16 %v522
    %v562 = vunpack.c.l.b16 %v523
    %v563 = vunpack.c.l.b16 %v524
    %v564 = vunpack.c.l.b16 %v525
    %v565 = vunpack.c.l.b16 %v526
    %v566 = vunpack.c.l.b16 %v527
    %v567 = vunpack.c.l.b16 %v528
    %v568 = vunpack.c.l.b16 %v529
    %v569 = vunpack.c.l.b16 %v530
    %v570 = vunpack.c.l.b16 %v531
    %v571 = vunpack.c.l.b16 %v532
    %v572 = vunpack.c.l.b16 %v533
    %v573 = vunpack.c.l.b16 %v534
    %v574 = vpack.c.b16 %v559, %v558
    %v575 = vpack.c.b16 %v561, %v560
    %v576 = vpack.c.b16 %v563, %v562
    %v577 = vpack.c.b16 %v565, %v564
    %v578 = vpack.c.b16 %v567, %v566
    %v579 = vpack.c.b16 %v569, %v568
    %v580 = vpack.c.b16 %v571, %v570
    %v581 = vpack.c.b16 %v573, %v572
    %590 = vmatprep.subr.bf16.mxu0 0
    %591 = vmatpush1.bf16.msra.mxu0 %v581
    %592 = vmatprep.subr.bf16.mxu0 0
    %593 = vmatpush1.bf16.msra.mxu0 %v580
    %594 = vmatprep.subr.bf16.mxu0 0
    %595 = vmatpush1.bf16.msra.mxu0 %v579
    %596 = vmatprep.subr.bf16.mxu0 0
    %597 = vmatpush1.bf16.msra.mxu0 %v578
    %598 = vmatprep.subr.bf16.mxu0 0
    %599 = vmatpush1.bf16.msra.mxu0 %v577
    %600 = vmatprep.subr.bf16.mxu0 0
    %601 = vmatpush1.bf16.msra.mxu0 %v576
    %602 = vmatprep.subr.bf16.mxu0 0
    %603 = vmatpush1.bf16.msra.mxu0 %v575
    %604 = vmatprep.subr.bf16.mxu0 0
    %605 = vmatpush1.bf16.msra.mxu0 %v574
    %606 = vmatprep.subr.bf16.mxu0 0
    %607 = vmatpush2.bf16.msra.mxu0 0
    %608 = vmatprep.subr.bf16.mxu0 0
    %609 = vmatpush2.bf16.msra.mxu0 0
    %610 = vmatprep.subr.bf16.mxu0 0
    %611 = vmatpush2.bf16.msra.mxu0 0
    %612 = vmatprep.subr.bf16.mxu0 0
    %613 = vmatpush2.bf16.msra.mxu0 0
    %614 = vmatprep.subr.bf16.mxu0 0
    %615 = vmatpush2.bf16.msra.mxu0 0
    %616 = vmatprep.subr.bf16.mxu0 0
    %617 = vmatpush2.bf16.msra.mxu0 0
    %618 = vmatprep.subr.bf16.mxu0 0
    %619 = vmatpush2.bf16.msra.mxu0 0
    %620 = vmatprep.subr.bf16.mxu0 0
    %621 = vmatpush2.bf16.msra.mxu0 0
    %622 = vmatprep.mubr.bf16.mxu0 0
    %623 = vmatmul.mubr.bf16.gmra.mxu0 %v518
    %v624 = vpop.f32.mrf.mxu0
    %v625 = vadd.f32 %v540, %v624
    %v626 = vpop.f32.mrf.mxu0
    %v627 = vpop.f32.mrf.mxu0
    %v628 = vpop.f32.mrf.mxu0
    %629 = vdwg.mxu0
    %v630 = vmax.f32 %v625, 0.0
    %v631 = vpack.c.bf16 %v630, %v630
    %v632 = vld [vmem:[#allocation13] sm:$0xf]
    %v633 = vld [vmem:[#allocation13 + $0x4] sm:$0xf]
    %v634 = vld [vmem:[#allocation13 + $0x8] sm:$0xf]
    %v635 = vld [vmem:[#allocation13 + $0xc] sm:$0xf]
    %v636 = vld [vmem:[#allocation13 + $0x10] sm:$0xf]
    %v637 = vld [vmem:[#allocation13 + $0x14] sm:$0xf]
    %v638 = vld [vmem:[#allocation13 + $0x18] sm:$0xf]
    %v639 = vld [vmem:[#allocation13 + $0x1c] sm:$0xf]
    %v640 = vld [vmem:[#allocation13 + $0x20] sm:$0xf]
    %v641 = vld [vmem:[#allocation13 + $0x24] sm:$0xf]
    %v642 = vld [vmem:[#allocation13 + $0x28] sm:$0xf]
    %v643 = vld [vmem:[#allocation13 + $0x2c] sm:$0xf]
    %v644 = vld [vmem:[#allocation13 + $0x30] sm:$0xf]
    %v645 = vld [vmem:[#allocation13 + $0x34] sm:$0xf]
    %v646 = vld [vmem:[#allocation13 + $0x38] sm:$0xf]
    %v647 = vld [vmem:[#allocation13 + $0x3c] sm:$0xf]
    %v648 = vld [vmem:[%s11] sm:$0x1]
    %v650 = vlaneseq
    %v651 = vshrl.u32 %v650, 7
    %v652 = vsub.s32 0, %v651
    %v653 = vrot.slane %v648, %v652
    %v671 = vunpack.c.l.b16 %v632
    %v672 = vunpack.c.l.b16 %v633
    %v673 = vunpack.c.l.b16 %v634
    %v674 = vunpack.c.l.b16 %v635
    %v675 = vunpack.c.l.b16 %v636
    %v676 = vunpack.c.l.b16 %v637
    %v677 = vunpack.c.l.b16 %v638
    %v678 = vunpack.c.l.b16 %v639
    %v679 = vunpack.c.l.b16 %v640
    %v680 = vunpack.c.l.b16 %v641
    %v681 = vunpack.c.l.b16 %v642
    %v682 = vunpack.c.l.b16 %v643
    %v683 = vunpack.c.l.b16 %v644
    %v684 = vunpack.c.l.b16 %v645
    %v685 = vunpack.c.l.b16 %v646
    %v686 = vunpack.c.l.b16 %v647
    %v687 = vpack.c.b16 %v672, %v671
    %v688 = vpack.c.b16 %v674, %v673
    %v689 = vpack.c.b16 %v676, %v675
    %v690 = vpack.c.b16 %v678, %v677
    %v691 = vpack.c.b16 %v680, %v679
    %v692 = vpack.c.b16 %v682, %v681
    %v693 = vpack.c.b16 %v684, %v683
    %v694 = vpack.c.b16 %v686, %v685
    %703 = vmatprep.subr.bf16.mxu0 0
    %704 = vmatpush1.bf16.msra.mxu0 %v694
    %705 = vmatprep.subr.bf16.mxu0 0
    %706 = vmatpush1.bf16.msra.mxu0 %v693
    %707 = vmatprep.subr.bf16.mxu0 0
    %708 = vmatpush1.bf16.msra.mxu0 %v692
    %709 = vmatprep.subr.bf16.mxu0 0
    %710 = vmatpush1.bf16.msra.mxu0 %v691
    %711 = vmatprep.subr.bf16.mxu0 0
    %712 = vmatpush1.bf16.msra.mxu0 %v690
    %713 = vmatprep.subr.bf16.mxu0 0
    %714 = vmatpush1.bf16.msra.mxu0 %v689
    %715 = vmatprep.subr.bf16.mxu0 0
    %716 = vmatpush1.bf16.msra.mxu0 %v688
    %717 = vmatprep.subr.bf16.mxu0 0
    %718 = vmatpush1.bf16.msra.mxu0 %v687
    %719 = vmatprep.subr.bf16.mxu0 0
    %720 = vmatpush2.bf16.msra.mxu0 0
    %721 = vmatprep.subr.bf16.mxu0 0
    %722 = vmatpush2.bf16.msra.mxu0 0
    %723 = vmatprep.subr.bf16.mxu0 0
    %724 = vmatpush2.bf16.msra.mxu0 0
    %725 = vmatprep.subr.bf16.mxu0 0
    %726 = vmatpush2.bf16.msra.mxu0 0
    %727 = vmatprep.subr.bf16.mxu0 0
    %728 = vmatpush2.bf16.msra.mxu0 0
    %729 = vmatprep.subr.bf16.mxu0 0
    %730 = vmatpush2.bf16.msra.mxu0 0
    %731 = vmatprep.subr.bf16.mxu0 0
    %732 = vmatpush2.bf16.msra.mxu0 0
    %733 = vmatprep.subr.bf16.mxu0 0
    %734 = vmatpush2.bf16.msra.mxu0 0
    %735 = vmatprep.mubr.bf16.mxu0 0
    %736 = vmatmul.mubr.bf16.gmra.mxu0 %v631
    %v737 = vpop.f32.mrf.mxu0
    %v738 = vadd.f32 %v653, %v737
    %v739 = vpop.f32.mrf.mxu0
    %v740 = vpop.f32.mrf.mxu0
    %v741 = vpop.f32.mrf.mxu0
    %742 = vdwg.mxu0
    %v743 = vmax.f32 %v738, 0.0
    %744 = vst [vmem:[#allocation14] sm:$0xff] %v743
    %745 = vst [vmem:[#allocation15] sm:$0xff] %v395
    %746 = vst [vmem:[#allocation17] sm:$0xff] %v401
    // Predicated region
    $region78: #{tpu_custom_call.1} parent=1 // pred_check
      _
    $region79: #{tpu_custom_call.1} parent=1 // pred_check_branch
      %748 = sbr.rel (0) target = $region81
    $region80: #{tpu_custom_call.1} parent=1 // pred_region
      %s750 = ssub.s32 128, 128
      %751 = vsyncadd [#allocation4], %s750
      %s753 = sshll.u32 [#allocation14], 4
      %s754 = int_to_ptr.vmem [resolvable:$true] %s753
      %756 = dma.vmem_to_hbm [thread:$0]  %s754, 128, %s12, [#allocation4]
    $region81: #{tpu_custom_call.1} parent=1 // pred_fallthru
      _
    // Predicated region
    $region82: #{tpu_custom_call.1} parent=1 // pred_check
      _
    $region83: #{tpu_custom_call.1} parent=1 // pred_check_branch
      %758 = sbr.rel (0) target = $region85
    $region84: #{tpu_custom_call.1} parent=1 // pred_region
      %s760 = ssub.s32 128, 128
      %761 = vsyncadd [#allocation16], %s760
      %s763 = sshll.u32 [#allocation15], 4
      %s764 = int_to_ptr.vmem [resolvable:$true] %s763
      %766 = dma.vmem_to_hbm [thread:$0]  %s764, 128, %s13, [#allocation16]
    $region85: #{tpu_custom_call.1} parent=1 // pred_fallthru
      _
    // Predicated region
    $region86: #{tpu_custom_call.1} parent=1 // pred_check
      _
    $region87: #{tpu_custom_call.1} parent=1 // pred_check_branch
      %768 = sbr.rel (0) target = $region89
    $region88: #{tpu_custom_call.1} parent=1 // pred_region
      %s770 = ssub.s32 128, 128
      %771 = vsyncadd [#allocation16], %s770
      %s773 = sshll.u32 [#allocation17], 4
      %s774 = int_to_ptr.vmem [resolvable:$true] %s773
      %776 = dma.vmem_to_hbm [thread:$0]  %s774, 128, %s14, [#allocation16]
    $region89: #{tpu_custom_call.1} parent=1 // pred_fallthru
      _
    // Predicated region
    $region90: #{tpu_custom_call.1} parent=1 // pred_check
      _
    $region91: #{tpu_custom_call.1} parent=1 // pred_check_branch
      %778 = sbr.rel (0) target = $region93
    $region92: #{tpu_custom_call.1} parent=1 // pred_region
      %779 = dma.done [#allocation4], 128
    $region93: #{tpu_custom_call.1} parent=1 // pred_fallthru
      _
    // Predicated region
    $region94: #{tpu_custom_call.1} parent=1 // pred_check
      _
    $region95: #{tpu_custom_call.1} parent=1 // pred_check_branch
      %781 = sbr.rel (0) target = $region97
    $region96: #{tpu_custom_call.1} parent=1 // pred_region
      %782 = dma.done [#allocation16], 128
    $region97: #{tpu_custom_call.1} parent=1 // pred_fallthru
      _
    // Predicated region
    $region98: #{tpu_custom_call.1} parent=1 // pred_check
      _
    $region99: #{tpu_custom_call.1} parent=1 // pred_check_branch
      %784 = sbr.rel (0) target = $region101
    $region100: #{tpu_custom_call.1} parent=1 // pred_region
      %785 = dma.done [#allocation16], 128
    $region101: #{tpu_custom_call.1} parent=1 // pred_fallthru
      _
    %786 = vsyncpa [#allocation3], 1
    %787 = vsyncpa [#allocation6], 1
    %788 = vsyncpa [#allocation9], 1
    %789 = vsyncpa [#allocation12], 1
    %790 = vsyncpa [#allocation4], 1
    %791 = vsyncpa [#allocation16], 1

</llo_original>
